<compile_context>
chip_gen: v7x
topology: tpu7x:2x2x1
jax: 0.10.0
libtpu: 0.0.40
codegen_flags: <defaults>
</compile_context>

<pallas_src>
import functools

import jax
import jax.numpy as jnp
from jax.experimental import pallas as pl
from jax.experimental.pallas import tpu as pltpu


# ----------------------------------------------------------------------------
# Helpers
# ----------------------------------------------------------------------------
def _round_up(x, m):
    return ((x + m - 1) // m) * m


def _largest_tile(total, cap, align):
    """Largest divisor of `total` that is a multiple of `align` and <= cap,
    falling back to the full extent (full-dim blocks are always legal)."""
    if total <= cap:
        return total
    t = (cap // align) * align
    while t >= align:
        if total % t == 0:
            return t
        t -= align
    return total


def _vmem_limit_bytes(working_set_bytes):
    """~2x headroom over the computed working set, capped at 3/4 of the
    chip's physical VMEM (48 MiB fallback if the info query is unavailable)."""
    cap = 48 << 20
    try:
        cap = int(pltpu.get_tpu_info().vmem_capacity_bytes) * 3 // 4
    except Exception:
        pass
    cap = max(cap, 32 << 20)
    return int(min(max(2 * working_set_bytes, 32 << 20), cap))


# ----------------------------------------------------------------------------
# Kernel A: norm-free conv block, batch folded into M, M-tiled, K untiled.
#   patches (TM, K) bf16 @ resident w (K, Cout) bf16 -> f32 -> +bias [-> LReLU]
# ----------------------------------------------------------------------------
def _flat_conv_kernel(p_ref, w_ref, b_ref, o_ref, *, act):
    y = jnp.dot(p_ref[...], w_ref[...], preferred_element_type=jnp.float32)
    y = y + b_ref[...]
    if act:
        y = jnp.where(y >= 0, y, 0.2 * y)          # LeakyReLU(0.2)
    o_ref[...] = y.astype(o_ref.dtype)


def _flat_conv_kernel_nobias(p_ref, w_ref, o_ref, *, act):
    y = jnp.dot(p_ref[...], w_ref[...], preferred_element_type=jnp.float32)
    if act:
        y = jnp.where(y >= 0, y, 0.2 * y)          # LeakyReLU(0.2)
    o_ref[...] = y.astype(o_ref.dtype)


def conv_flat_pallas(patches, w_flat, bias, *, act, out_dtype):
    """patches: (M, K); w_flat: (K, Cout); bias: (Cout,) or None."""
    M, K = patches.shape
    Cout = w_flat.shape[1]
    out_itemsize = jnp.dtype(out_dtype).itemsize

    # Cap TM so a double-buffered bf16 patch tile stays around <= 16 MiB.
    tm_cap = max(256, min(1024, (8 << 20) // max(2 * K, 1)))
    tm_cap = max(8, (tm_cap // 8) * 8)
    TM = min(tm_cap, _round_up(M, 8))
    M_pad = _round_up(M, TM)
    if M_pad != M:
        patches = jnp.pad(patches, ((0, M_pad - M), (0, 0)))

    patches = patches.astype(jnp.bfloat16)
    w_flat = w_flat.astype(jnp.bfloat16)

    vmem = _vmem_limit_bytes(
        2 * TM * K * 2                 # double-buffered patch tile (bf16)
        + 2 * K * Cout * 2             # resident weight (allocated 2x)
        + 2 * TM * Cout * out_itemsize # double-buffered output tile
        + 2 * Cout * 4)                # bias

    in_specs = [
        pl.BlockSpec((TM, K), lambda m: (m, 0)),
        pl.BlockSpec((K, Cout), lambda m: (0, 0)),     # resident: fetched once
    ]
    args = [patches, w_flat]
    if bias is not None:
        in_specs.append(pl.BlockSpec((1, Cout), lambda m: (0, 0)))
        args.append(bias.reshape(1, Cout).astype(jnp.float32))
        kernel = functools.partial(_flat_conv_kernel, act=act)
    else:
        kernel = functools.partial(_flat_conv_kernel_nobias, act=act)

    y = pl.pallas_call(
        kernel,
        out_shape=jax.ShapeDtypeStruct((M_pad, Cout), out_dtype),
        grid_spec=pltpu.PrefetchScalarGridSpec(
            num_scalar_prefetch=0,
            grid=(M_pad // TM,),
            in_specs=in_specs,
            out_specs=pl.BlockSpec((TM, Cout), lambda m: (m, 0)),
        ),
        compiler_params=pltpu.CompilerParams(
            dimension_semantics=("parallel",),
            vmem_limit_bytes=vmem),
    )(*args)
    return y[:M] if M_pad != M else y


# ----------------------------------------------------------------------------
# Kernel B: conv + InstanceNorm + LeakyReLU, per-sample, K-tiled, full-P block.
#   Weight is fully resident in VMEM (constant index_map) and sliced per K
#   step in-kernel.  Bias is dropped: a per-channel bias is exactly cancelled
#   by the per-channel mean subtraction of InstanceNorm.
# ----------------------------------------------------------------------------
def _norm_conv_kernel(p_ref, w_ref, o_ref, acc_ref, *, act, tk):
    k = pl.program_id(1)

    @pl.when(k == 0)
    def _():
        acc_ref[...] = jnp.zeros_like(acc_ref)

    k_off = pl.multiple_of(k * tk, tk)
    acc_ref[...] += jnp.dot(p_ref[0], w_ref[pl.ds(k_off, tk), :],
                            preferred_element_type=jnp.float32)

    @pl.when(k == pl.num_programs(1) - 1)
    def _():
        y = acc_ref[...]
        # InstanceNorm2d(affine=False): per-sample, per-channel over spatial P.
        mean = jnp.mean(y, axis=0, keepdims=True)
        var = jnp.mean(jnp.square(y - mean), axis=0, keepdims=True)
        y = (y - mean) * jax.lax.rsqrt(var + 1e-5)
        if act:
            y = jnp.where(y >= 0, y, 0.2 * y)      # LeakyReLU(0.2)
        o_ref[0] = y.astype(o_ref.dtype)


def conv_norm_pallas(patches, w_flat, *, act, out_dtype):
    """patches: (N, P, K); w_flat: (K, Cout)."""
    N, P, K = patches.shape
    Cout = w_flat.shape[1]
    out_itemsize = jnp.dtype(out_dtype).itemsize
    TK = _largest_tile(K, 512, 128)

    patches = patches.astype(jnp.bfloat16)
    w_flat = w_flat.astype(jnp.bfloat16)

    vmem = _vmem_limit_bytes(
        2 * P * TK * 2                 # double-buffered patch tile (bf16)
        + 2 * K * Cout * 2             # resident weight (allocated 2x)
        + 2 * P * Cout * out_itemsize  # double-buffered output tile
        + P * Cout * 4)                # f32 accumulator scratch

    kernel = functools.partial(_norm_conv_kernel, act=act, tk=TK)
    return pl.pallas_call(
        kernel,
        out_shape=jax.ShapeDtypeStruct((N, P, Cout), out_dtype),
        grid_spec=pltpu.PrefetchScalarGridSpec(
            num_scalar_prefetch=0,
            grid=(N, K // TK),
            in_specs=[
                pl.BlockSpec((1, P, TK), lambda n, k: (n, 0, k)),
                pl.BlockSpec((K, Cout), lambda n, k: (0, 0)),   # resident
            ],
            out_specs=pl.BlockSpec((1, P, Cout), lambda n, k: (n, 0, 0)),
            scratch_shapes=[pltpu.VMEM((P, Cout), jnp.float32)],
        ),
        compiler_params=pltpu.CompilerParams(
            dimension_semantics=("parallel", "arbitrary"),
            vmem_limit_bytes=vmem),
    )(patches, w_flat)


# ----------------------------------------------------------------------------
# Glue: NHWC im2col with channel-contiguous K ordering (kh, kw, Cin).
# Only pad + strided slices + concat + reshape (no multi-D transposes).
# ----------------------------------------------------------------------------
def extract_patches_nhwc(x, k, stride, pad):
    N, H, W, C = x.shape
    xp = jnp.pad(x, ((0, 0), (pad, pad), (pad, pad), (0, 0)))
    Hp, Wp = H + 2 * pad, W + 2 * pad
    Ho = (Hp - k) // stride + 1
    Wo = (Wp - k) // stride + 1
    slabs = []
    for di in range(k):
        for dj in range(k):
            slabs.append(xp[:, di:di + stride * Ho:stride,
                            dj:dj + stride * Wo:stride, :])
    p = jnp.concatenate(slabs, axis=-1)          # (N, Ho, Wo, k*k*C), C fastest
    return p.reshape(N, Ho * Wo, k * k * C), Ho, Wo


def _flatten_weight(w):
    """OIHW -> (K, Cout) with K ordered (kh, kw, Cin) to match the patches."""
    cout = w.shape[0]
    return w.transpose(0, 2, 3, 1).reshape(cout, -1).T


# ----------------------------------------------------------------------------
# Full forward pass of Discriminator1
# ----------------------------------------------------------------------------
def discriminator1_forward(params, img_A, img_B):
    x = jnp.concatenate([img_A, img_B], axis=1)              # NCHW concat
    N = x.shape[0]
    x = jnp.transpose(x, (0, 2, 3, 1)).astype(jnp.bfloat16)  # NHWC, bf16

    # Layer 1: conv(2*in -> 64), stride 2, no norm, LReLU. Batch folded into M.
    patches, Ho, Wo = extract_patches_nhwc(x, 4, 2, 1)
    P = Ho * Wo
    y = conv_flat_pallas(patches.reshape(N * P, -1),
                         _flatten_weight(params["w1"]), params["b1"],
                         act=True, out_dtype=jnp.bfloat16)
    x = y.reshape(N, Ho, Wo, -1)

    # Layers 2-4: conv stride 2 + InstanceNorm + LReLU (fused in one kernel).
    # Conv bias is dropped (cancelled by InstanceNorm's mean subtraction).
    for wk in ("w2", "w3", "w4"):
        patches, Ho, Wo = extract_patches_nhwc(x, 4, 2, 1)
        y = conv_norm_pallas(patches, _flatten_weight(params[wk]),
                             act=True, out_dtype=jnp.bfloat16)
        x = y.reshape(N, Ho, Wo, -1)

    # ZeroPad2d((left=1, right=0, top=1, bottom=0)) in NHWC.
    x = jnp.pad(x, ((0, 0), (1, 0), (1, 0), (0, 0)))

    # Final conv(512 -> 1, k=4, s=1, p=1, bias=False), no norm/act.
    # Pad Cout to 128 so the output store is lane-dense; slice channel 0 after.
    patches, Ho, Wo = extract_patches_nhwc(x, 4, 1, 1)
    P = Ho * Wo
    w_flat = _flatten_weight(params["w5"])                    # (K, 1)
    w_pad = jnp.pad(w_flat, ((0, 0), (0, 127)))               # (K, 128)
    y = conv_flat_pallas(patches.reshape(N * P, -1), w_pad, None,
                         act=False, out_dtype=jnp.float32)
    y = y[:, :1].reshape(N, Ho, Wo, 1)
    return jnp.transpose(y, (0, 3, 1, 2))                     # NCHW out


# ----------------------------------------------------------------------------
# Precision-matched pure-JAX reference (bf16 matmul inputs, f32 accumulation,
# bf16 inter-layer activations) for correctness checking.
# ----------------------------------------------------------------------------
def ref_forward(params, img_A, img_B):
    bf16 = jnp.bfloat16

    def conv(x, w, b, stride, pad):
        y = jax.lax.conv_general_dilated(
            x.astype(bf16), w.astype(bf16), (stride, stride),
            ((pad, pad), (pad, pad)),
            dimension_numbers=("NCHW", "OIHW", "NCHW"),
            preferred_element_type=jnp.float32)
        if b is not None:
            y = y + b[None, :, None, None].astype(jnp.float32)
        return y

    def inorm(x):
        m = jnp.mean(x, axis=(2, 3), keepdims=True)
        v = jnp.mean(jnp.square(x - m), axis=(2, 3), keepdims=True)
        return (x - m) * jax.lax.rsqrt(v + 1e-5)

    def lrelu(x):
        return jnp.where(x >= 0, x, 0.2 * x)

    x = jnp.concatenate([img_A, img_B], axis=1)
    x = lrelu(conv(x, params["w1"], params["b1"], 2, 1)).astype(bf16)
    x = lrelu(inorm(conv(x, params["w2"], params["b2"], 2, 1))).astype(bf16)
    x = lrelu(inorm(conv(x, params["w3"], params["b3"], 2, 1))).astype(bf16)
    x = lrelu(inorm(conv(x, params["w4"], params["b4"], 2, 1))).astype(bf16)
    x = jnp.pad(x, ((0, 0), (0, 0), (1, 0), (1, 0)))
    x = conv(x, params["w5"], None, 1, 1)
    return x


# ----------------------------------------------------------------------------
# Deterministic parameter init (PyTorch Conv2d-style uniform bounds)
# ----------------------------------------------------------------------------
def init_params(key, in_channels=3):
    def init_conv(k, cout, cin, ksz, bias=True):
        kw, kb = jax.random.split(k)
        fan_in = cin * ksz * ksz
        bound = 1.0 / (fan_in ** 0.5)
        w = jax.random.uniform(kw, (cout, cin, ksz, ksz), jnp.float32,
                               -bound, bound)
        b = (jax.random.uniform(kb, (cout,), jnp.float32, -bound, bound)
             if bias else None)
        return w, b

    keys = jax.random.split(key, 5)
    w1, b1 = init_conv(keys[0], 64, in_channels * 2, 4)
    w2, b2 = init_conv(keys[1], 128, 64, 4)
    w3, b3 = init_conv(keys[2], 256, 128, 4)
    w4, b4 = init_conv(keys[3], 512, 256, 4)
    w5, _ = init_conv(keys[4], 1, 512, 4, bias=False)
    return dict(w1=w1, b1=b1, w2=w2, b2=b2, w3=w3, b3=b3,
                w4=w4, b4=b4, w5=w5)


if __name__ == "__main__":
    key = jax.random.PRNGKey(0)
    kp, ka, kb = jax.random.split(key, 3)

    params = init_params(kp, in_channels=3)

    # Small NCHW inputs: batch=2, channels=3, spatial=32x32
    img_A = jax.random.normal(ka, (2, 3, 32, 32), jnp.float32)
    img_B = jax.random.normal(kb, (2, 3, 32, 32), jnp.float32)

    out = jax.block_until_ready(discriminator1_forward(params, img_A, img_B))
    ref = jax.block_until_ready(ref_forward(params, img_A, img_B))

    assert out.shape == ref.shape == (2, 1, 2, 2), out.shape
    max_err = float(jnp.max(jnp.abs(out - ref)))
    assert jnp.allclose(out, ref, atol=3e-2, rtol=3e-2), max_err

    print("KERNEL_OK")
</pallas_src>

<mosaic_0001>
module attributes {stable_mosaic.version = 11 : i64} {
  func.func @_flat_conv_kernel(%arg0: i32, %arg1: memref<512x96xbf16, #tpu.memory_space<vmem>>, %arg2: memref<96x64xbf16, #tpu.memory_space<vmem>>, %arg3: memref<1x64xf32, #tpu.memory_space<vmem>>, %arg4: memref<512x64xbf16, #tpu.memory_space<vmem>>) attributes {dimension_semantics = [#tpu.dimension_semantics<parallel>], iteration_bounds = array<i64: 1>, scalar_prefetch = 0 : i64, scratch_operands = 0 : i64, tpu.core_type = #tpu.core_type<tc>, window_params = [{transform_indices = @transform_0, window_bounds = array<i64: 512, 96>}, {pipeline_mode = #tpu.pipeline_mode<synchronous>, transform_indices = @transform_1, window_bounds = array<i64: 96, 64>}, {pipeline_mode = #tpu.pipeline_mode<synchronous>, transform_indices = @transform_2, window_bounds = array<i64: 1, 64>}, {transform_indices = @transform_3, window_bounds = array<i64: 512, 64>}]} {
    %c0 = arith.constant 0 : index
    %c0_0 = arith.constant 0 : index
    %0 = vector.load %arg1[%c0, %c0_0] : memref<512x96xbf16, #tpu.memory_space<vmem>>, vector<512x96xbf16>
    %c0_1 = arith.constant 0 : index
    %c0_2 = arith.constant 0 : index
    %1 = vector.load %arg2[%c0_1, %c0_2] : memref<96x64xbf16, #tpu.memory_space<vmem>>, vector<96x64xbf16>
    %cst = arith.constant dense<0.000000e+00> : vector<512x64xf32>
    %2 = tpu.matmul %0, %1, %cst {dimension_numbers = #tpu.dot_dimension_numbers<[1], [0], [0], [1], [0, 0, 1, 1], [], []>} : vector<512x96xbf16>, vector<96x64xbf16>, vector<512x64xf32> -> vector<512x64xf32>
    %c0_3 = arith.constant 0 : index
    %c0_4 = arith.constant 0 : index
    %3 = vector.load %arg3[%c0_3, %c0_4] : memref<1x64xf32, #tpu.memory_space<vmem>>, vector<1x64xf32>
    %4 = vector.broadcast %3 : vector<1x64xf32> to vector<512x64xf32>
    %5 = arith.addf %2, %4 : vector<512x64xf32>
    %cst_5 = arith.constant 0.000000e+00 : f32
    %6 = vector.broadcast %cst_5 : f32 to vector<512x64xf32>
    %7 = arith.cmpf oge, %5, %6 : vector<512x64xf32>
    %cst_6 = arith.constant 2.000000e-01 : f32
    %8 = vector.broadcast %cst_6 : f32 to vector<512x64xf32>
    %9 = arith.mulf %8, %5 : vector<512x64xf32>
    %10 = arith.select %7, %5, %9 : vector<512x64xi1>, vector<512x64xf32>
    %11 = arith.truncf %10 : vector<512x64xf32> to vector<512x64xbf16>
    %c0_7 = arith.constant 0 : index
    %c0_8 = arith.constant 0 : index
    %12 = vector.load %arg4[%c0_7, %c0_8] : memref<512x64xbf16, #tpu.memory_space<vmem>>, vector<512x64xbf16>
    tpu.vector_store %arg4[%c0_7, %c0_8], %11 {strides = array<i32>} : memref<512x64xbf16, #tpu.memory_space<vmem>>, vector<512x64xbf16>,
    return
  }
  func.func @transform_0(%arg0: i32) -> (i32, i32) {
    %c0_i32 = arith.constant 0 : i32
    %c0_i32_0 = arith.constant 0 : i32
    return %arg0, %c0_i32 : i32, i32
  }
  func.func @transform_1(%arg0: i32) -> (i32, i32) {
    %c0_i32 = arith.constant 0 : i32
    %c0_i32_0 = arith.constant 0 : i32
    %c0_i32_1 = arith.constant 0 : i32
    return %c0_i32, %c0_i32_0 : i32, i32
  }
  func.func @transform_2(%arg0: i32) -> (i32, i32) {
    %c0_i32 = arith.constant 0 : i32
    %c0_i32_0 = arith.constant 0 : i32
    %c0_i32_1 = arith.constant 0 : i32
    return %c0_i32, %c0_i32_0 : i32, i32
  }
  func.func @transform_3(%arg0: i32) -> (i32, i32) {
    %c0_i32 = arith.constant 0 : i32
    %c0_i32_0 = arith.constant 0 : i32
    return %arg0, %c0_i32 : i32, i32
  }
}

</mosaic_0001>

<llo_original>
// kernel: tpu_custom_call.1
$region0: #{tpu_custom_call.1}
  #allocation0 [shape = 'u32[]', space=smem, size = 0x4, offset = 0x4, fixed_abs, tag = 'smem constant byte address 0x4 - core index']
  #allocation1 [shape = 'u32[144,128]{1,0:T(1,128)}', space=vmem, size = 0x12000, scoped, tag = 'internal scratch']
  %s0 = inlined_call_operand.vmem [shape: bf16[512,96], index: 0, kind: input, shape index: {}]
  %s1 = inlined_call_operand.vmem [shape: bf16[96,64], index: 1, kind: input, shape index: {}]
  %s2 = inlined_call_operand.vmem [shape: f32[1,64], index: 2, kind: input, shape index: {}]
  %s3 = inlined_call_operand.vmem [shape: bf16[512,64], index: 3, kind: output, shape index: {}]
  %s4 = sld [smem:[#allocation0]]
  $region22: #{tpu_custom_call.1} parent=0
    _
  %s6 = ssub.s32 1, %s4
  %s7 = scalar_select 0, %s6, %s4
  // Predicated region
  $region2: #{tpu_custom_call.1} parent=0 // pred_check
    _
  $region3: #{tpu_custom_call.1} parent=0 // pred_check_branch
    %9 = sbr.rel (0) target = $region5
  $region4: #{tpu_custom_call.1} parent=0 // pred_region
    _
  $region5: #{tpu_custom_call.1} parent=0 // pred_fallthru
    _
  // Predicated region
  $region6: #{tpu_custom_call.1} parent=0 // pred_check
    _
  $region7: #{tpu_custom_call.1} parent=0 // pred_check_branch
    %11 = sbr.rel (0) target = $region9
  $region8: #{tpu_custom_call.1} parent=0 // pred_region
    _
  $region9: #{tpu_custom_call.1} parent=0 // pred_fallthru
    _
  // Predicated region
  $region10: #{tpu_custom_call.1} parent=0 // pred_check
    _
  $region11: #{tpu_custom_call.1} parent=0 // pred_check_branch
    %13 = sbr.rel (0) target = $region13
  $region12: #{tpu_custom_call.1} parent=0 // pred_region
    _
  $region13: #{tpu_custom_call.1} parent=0 // pred_fallthru
    _
  %v15 = vld [vmem:[%s0] sm:$0xf]
  %v16 = vld [vmem:[%s0 + $0x4] sm:$0xf]
  %v17 = vld [vmem:[%s0 + $0x8] sm:$0xf]
  %v18 = vld [vmem:[%s0 + $0xc] sm:$0xf]
  %v19 = vld [vmem:[%s0 + $0x10] sm:$0xf]
  %v20 = vld [vmem:[%s0 + $0x14] sm:$0xf]
  %v21 = vld [vmem:[%s0 + $0x18] sm:$0xf]
  %v22 = vld [vmem:[%s0 + $0x1c] sm:$0xf]
  %v23 = vld [vmem:[%s0 + $0x20] sm:$0xf]
  %v24 = vld [vmem:[%s0 + $0x24] sm:$0xf]
  %v25 = vld [vmem:[%s0 + $0x28] sm:$0xf]
  %v26 = vld [vmem:[%s0 + $0x2c] sm:$0xf]
  %v27 = vld [vmem:[%s0 + $0x30] sm:$0xf]
  %v28 = vld [vmem:[%s0 + $0x34] sm:$0xf]
  %v29 = vld [vmem:[%s0 + $0x38] sm:$0xf]
  %v30 = vld [vmem:[%s0 + $0x3c] sm:$0xf]
  %v31 = vld [vmem:[%s0 + $0x40] sm:$0xf]
  %v32 = vld [vmem:[%s0 + $0x44] sm:$0xf]
  %v33 = vld [vmem:[%s0 + $0x48] sm:$0xf]
  %v34 = vld [vmem:[%s0 + $0x4c] sm:$0xf]
  %v35 = vld [vmem:[%s0 + $0x50] sm:$0xf]
  %v36 = vld [vmem:[%s0 + $0x54] sm:$0xf]
  %v37 = vld [vmem:[%s0 + $0x58] sm:$0xf]
  %v38 = vld [vmem:[%s0 + $0x5c] sm:$0xf]
  %v39 = vld [vmem:[%s0 + $0x60] sm:$0xf]
  %v40 = vld [vmem:[%s0 + $0x64] sm:$0xf]
  %v41 = vld [vmem:[%s0 + $0x68] sm:$0xf]
  %v42 = vld [vmem:[%s0 + $0x6c] sm:$0xf]
  %v43 = vld [vmem:[%s0 + $0x70] sm:$0xf]
  %v44 = vld [vmem:[%s0 + $0x74] sm:$0xf]
  %v45 = vld [vmem:[%s0 + $0x78] sm:$0xf]
  %v46 = vld [vmem:[%s0 + $0x7c] sm:$0xf]
  %v47 = vld [vmem:[%s0 + $0x80] sm:$0xf]
  %v48 = vld [vmem:[%s0 + $0x84] sm:$0xf]
  %v49 = vld [vmem:[%s0 + $0x88] sm:$0xf]
  %v50 = vld [vmem:[%s0 + $0x8c] sm:$0xf]
  %v51 = vld [vmem:[%s0 + $0x90] sm:$0xf]
  %v52 = vld [vmem:[%s0 + $0x94] sm:$0xf]
  %v53 = vld [vmem:[%s0 + $0x98] sm:$0xf]
  %v54 = vld [vmem:[%s0 + $0x9c] sm:$0xf]
  %v55 = vld [vmem:[%s0 + $0xa0] sm:$0xf]
  %v56 = vld [vmem:[%s0 + $0xa4] sm:$0xf]
  %v57 = vld [vmem:[%s0 + $0xa8] sm:$0xf]
  %v58 = vld [vmem:[%s0 + $0xac] sm:$0xf]
  %v59 = vld [vmem:[%s0 + $0xb0] sm:$0xf]
  %v60 = vld [vmem:[%s0 + $0xb4] sm:$0xf]
  %v61 = vld [vmem:[%s0 + $0xb8] sm:$0xf]
  %v62 = vld [vmem:[%s0 + $0xbc] sm:$0xf]
  %v63 = vld [vmem:[%s0 + $0xc0] sm:$0xf]
  %v64 = vld [vmem:[%s0 + $0xc4] sm:$0xf]
  %v65 = vld [vmem:[%s0 + $0xc8] sm:$0xf]
  %v66 = vld [vmem:[%s0 + $0xcc] sm:$0xf]
  %v67 = vld [vmem:[%s0 + $0xd0] sm:$0xf]
  %v68 = vld [vmem:[%s0 + $0xd4] sm:$0xf]
  %v69 = vld [vmem:[%s0 + $0xd8] sm:$0xf]
  %v70 = vld [vmem:[%s0 + $0xdc] sm:$0xf]
  %v71 = vld [vmem:[%s0 + $0xe0] sm:$0xf]
  %v72 = vld [vmem:[%s0 + $0xe4] sm:$0xf]
  %v73 = vld [vmem:[%s0 + $0xe8] sm:$0xf]
  %v74 = vld [vmem:[%s0 + $0xec] sm:$0xf]
  %v75 = vld [vmem:[%s0 + $0xf0] sm:$0xf]
  %v76 = vld [vmem:[%s0 + $0xf4] sm:$0xf]
  %v77 = vld [vmem:[%s0 + $0xf8] sm:$0xf]
  %v78 = vld [vmem:[%s0 + $0xfc] sm:$0xf]
  %v79 = vld [vmem:[%s1] sm:$0xf]
  %v80 = vld [vmem:[%s1 + $0x4] sm:$0xf]
  %v81 = vld [vmem:[%s1 + $0x8] sm:$0xf]
  %v82 = vld [vmem:[%s1 + $0xc] sm:$0xf]
  %v83 = vld [vmem:[%s1 + $0x10] sm:$0xf]
  %v84 = vld [vmem:[%s1 + $0x14] sm:$0xf]
  %v85 = vld [vmem:[%s1 + $0x18] sm:$0xf]
  %v86 = vld [vmem:[%s1 + $0x1c] sm:$0xf]
  %v87 = vld [vmem:[%s1 + $0x20] sm:$0xf]
  %v88 = vld [vmem:[%s1 + $0x24] sm:$0xf]
  %v89 = vld [vmem:[%s1 + $0x28] sm:$0xf]
  %v90 = vld [vmem:[%s1 + $0x2c] sm:$0xf]
  %v91 = vld [vmem:[%s2] sm:$0x1]
  %v93 = vlaneseq
  %v94 = vshrl.u32 %v93, 7
  %v95 = vsub.s32 0, %v94
  %v96 = vrot.slane %v91, %v95
  %v162 = vunpack.c.l.b16 %v15
  %v163 = vunpack.c.l.b16 %v16
  %v164 = vunpack.c.l.b16 %v17
  %v165 = vunpack.c.l.b16 %v18
  %v166 = vunpack.c.l.b16 %v19
  %v167 = vunpack.c.l.b16 %v20
  %v168 = vunpack.c.l.b16 %v21
  %v169 = vunpack.c.l.b16 %v22
  %v170 = vunpack.c.l.b16 %v23
  %v171 = vunpack.c.l.b16 %v24
  %v172 = vunpack.c.l.b16 %v25
  %v173 = vunpack.c.l.b16 %v26
  %v174 = vunpack.c.l.b16 %v27
  %v175 = vunpack.c.l.b16 %v28
  %v176 = vunpack.c.l.b16 %v29
  %v177 = vunpack.c.l.b16 %v30
  %v178 = vunpack.c.l.b16 %v31
  %v179 = vunpack.c.l.b16 %v32
  %v180 = vunpack.c.l.b16 %v33
  %v181 = vunpack.c.l.b16 %v34
  %v182 = vunpack.c.l.b16 %v35
  %v183 = vunpack.c.l.b16 %v36
  %v184 = vunpack.c.l.b16 %v37
  %v185 = vunpack.c.l.b16 %v38
  %v186 = vunpack.c.l.b16 %v39
  %v187 = vunpack.c.l.b16 %v40
  %v188 = vunpack.c.l.b16 %v41
  %v189 = vunpack.c.l.b16 %v42
  %v190 = vunpack.c.l.b16 %v43
  %v191 = vunpack.c.l.b16 %v44
  %v192 = vunpack.c.l.b16 %v45
  %v193 = vunpack.c.l.b16 %v46
  %v194 = vunpack.c.l.b16 %v47
  %v195 = vunpack.c.l.b16 %v48
  %v196 = vunpack.c.l.b16 %v49
  %v197 = vunpack.c.l.b16 %v50
  %v198 = vunpack.c.l.b16 %v51
  %v199 = vunpack.c.l.b16 %v52
  %v200 = vunpack.c.l.b16 %v53
  %v201 = vunpack.c.l.b16 %v54
  %v202 = vunpack.c.l.b16 %v55
  %v203 = vunpack.c.l.b16 %v56
  %v204 = vunpack.c.l.b16 %v57
  %v205 = vunpack.c.l.b16 %v58
  %v206 = vunpack.c.l.b16 %v59
  %v207 = vunpack.c.l.b16 %v60
  %v208 = vunpack.c.l.b16 %v61
  %v209 = vunpack.c.l.b16 %v62
  %v210 = vunpack.c.l.b16 %v63
  %v211 = vunpack.c.l.b16 %v64
  %v212 = vunpack.c.l.b16 %v65
  %v213 = vunpack.c.l.b16 %v66
  %v214 = vunpack.c.l.b16 %v67
  %v215 = vunpack.c.l.b16 %v68
  %v216 = vunpack.c.l.b16 %v69
  %v217 = vunpack.c.l.b16 %v70
  %v218 = vunpack.c.l.b16 %v71
  %v219 = vunpack.c.l.b16 %v72
  %v220 = vunpack.c.l.b16 %v73
  %v221 = vunpack.c.l.b16 %v74
  %v222 = vunpack.c.l.b16 %v75
  %v223 = vunpack.c.l.b16 %v76
  %v224 = vunpack.c.l.b16 %v77
  %v225 = vunpack.c.l.b16 %v78
  %v226 = vpack.c.b16 %v163, %v162
  %v227 = vpack.c.b16 %v165, %v164
  %v228 = vpack.c.b16 %v167, %v166
  %v229 = vpack.c.b16 %v169, %v168
  %v230 = vpack.c.b16 %v171, %v170
  %v231 = vpack.c.b16 %v173, %v172
  %v232 = vpack.c.b16 %v175, %v174
  %v233 = vpack.c.b16 %v177, %v176
  %v234 = vpack.c.b16 %v179, %v178
  %v235 = vpack.c.b16 %v181, %v180
  %v236 = vpack.c.b16 %v183, %v182
  %v237 = vpack.c.b16 %v185, %v184
  %v238 = vpack.c.b16 %v187, %v186
  %v239 = vpack.c.b16 %v189, %v188
  %v240 = vpack.c.b16 %v191, %v190
  %v241 = vpack.c.b16 %v193, %v192
  %v242 = vpack.c.b16 %v195, %v194
  %v243 = vpack.c.b16 %v197, %v196
  %v244 = vpack.c.b16 %v199, %v198
  %v245 = vpack.c.b16 %v201, %v200
  %v246 = vpack.c.b16 %v203, %v202
  %v247 = vpack.c.b16 %v205, %v204
  %v248 = vpack.c.b16 %v207, %v206
  %v249 = vpack.c.b16 %v209, %v208
  %v250 = vpack.c.b16 %v211, %v210
  %v251 = vpack.c.b16 %v213, %v212
  %v252 = vpack.c.b16 %v215, %v214
  %v253 = vpack.c.b16 %v217, %v216
  %v254 = vpack.c.b16 %v219, %v218
  %v255 = vpack.c.b16 %v221, %v220
  %v256 = vpack.c.b16 %v223, %v222
  %v257 = vpack.c.b16 %v225, %v224
  %v270 = vunpack.c.l.b16 %v79
  %v271 = vunpack.c.l.b16 %v80
  %v272 = vunpack.c.l.b16 %v81
  %v273 = vunpack.c.l.b16 %v82
  %v274 = vunpack.c.l.b16 %v83
  %v275 = vunpack.c.l.b16 %v84
  %v276 = vunpack.c.l.b16 %v85
  %v277 = vunpack.c.l.b16 %v86
  %v278 = vunpack.c.l.b16 %v87
  %v279 = vunpack.c.l.b16 %v88
  %v280 = vunpack.c.l.b16 %v89
  %v281 = vunpack.c.l.b16 %v90
  %v282 = vpack.c.b16 %v271, %v270
  %v283 = vpack.c.b16 %v273, %v272
  %v284 = vpack.c.b16 %v275, %v274
  %v285 = vpack.c.b16 %v277, %v276
  %v286 = vpack.c.b16 %v279, %v278
  %v287 = vpack.c.b16 %v281, %v280
  %vm294 = vcmask 785408
  %v296 = vsel %vm294, %v226, 0
  %v299 = vsel %vm294, %v227, 0
  %v302 = vsel %vm294, %v228, 0
  %v305 = vsel %vm294, %v229, 0
  %v308 = vsel %vm294, %v230, 0
  %v311 = vsel %vm294, %v231, 0
  %v314 = vsel %vm294, %v232, 0
  %v317 = vsel %vm294, %v233, 0
  %v320 = vsel %vm294, %v234, 0
  %v323 = vsel %vm294, %v235, 0
  %v326 = vsel %vm294, %v236, 0
  %v329 = vsel %vm294, %v237, 0
  %v332 = vsel %vm294, %v238, 0
  %v335 = vsel %vm294, %v239, 0
  %v338 = vsel %vm294, %v240, 0
  %v341 = vsel %vm294, %v241, 0
  %v344 = vsel %vm294, %v242, 0
  %v347 = vsel %vm294, %v243, 0
  %v350 = vsel %vm294, %v244, 0
  %v353 = vsel %vm294, %v245, 0
  %v356 = vsel %vm294, %v246, 0
  %v359 = vsel %vm294, %v247, 0
  %v362 = vsel %vm294, %v248, 0
  %v365 = vsel %vm294, %v249, 0
  %v368 = vsel %vm294, %v250, 0
  %v371 = vsel %vm294, %v251, 0
  %v374 = vsel %vm294, %v252, 0
  %v377 = vsel %vm294, %v253, 0
  %v380 = vsel %vm294, %v254, 0
  %v383 = vsel %vm294, %v255, 0
  %v386 = vsel %vm294, %v256, 0
  %v389 = vsel %vm294, %v257, 0
  %391 = vmatprep.subr.bf16.mxu0 0
  %392 = vmatpush1.bf16.msra.mxu0 %v282
  %393 = vmatprep.subr.bf16.mxu0 0
  %394 = vmatpush1.bf16.msra.mxu0 %v283
  %395 = vmatprep.subr.bf16.mxu0 0
  %396 = vmatpush1.bf16.msra.mxu0 %v284
  %397 = vmatprep.subr.bf16.mxu0 0
  %398 = vmatpush1.bf16.msra.mxu0 %v285
  %399 = vmatprep.subr.bf16.mxu0 0
  %400 = vmatpush1.bf16.msra.mxu0 %v286
  %401 = vmatprep.subr.bf16.mxu0 0
  %402 = vmatpush1.bf16.msra.mxu0 %v287
  %403 = vmatprep.subr.bf16.mxu0 0
  %404 = vmatpush1.bf16.msra.mxu0 0
  %405 = vmatprep.subr.bf16.mxu0 0
  %406 = vmatpush1.bf16.msra.mxu0 0
  %407 = vmatprep.subr.bf16.mxu0 0
  %408 = vmatpush1.bf16.msra.mxu0 0
  %409 = vmatprep.subr.bf16.mxu0 0
  %410 = vmatpush1.bf16.msra.mxu0 0
  %411 = vmatprep.subr.bf16.mxu0 0
  %412 = vmatpush1.bf16.msra.mxu0 0
  %413 = vmatprep.subr.bf16.mxu0 0
  %414 = vmatpush1.bf16.msra.mxu0 0
  %415 = vmatprep.subr.bf16.mxu0 0
  %416 = vmatpush1.bf16.msra.mxu0 0
  %417 = vmatprep.subr.bf16.mxu0 0
  %418 = vmatpush1.bf16.msra.mxu0 0
  %419 = vmatprep.subr.bf16.mxu0 0
  %420 = vmatpush1.bf16.msra.mxu0 0
  %421 = vmatprep.subr.bf16.mxu0 0
  %422 = vmatpush1.bf16.msra.mxu0 0
  %423 = vmatprep.mubr.bf16.mxu0 0
  %424 = vmatmul.mubr.bf16.gmra.mrb[0].mxu0 %v296
  %v425 = vpop.f32.mrb[0].mxu0
  %v426 = vadd.f32 %v96, %v425
  %v427 = vpop.f32.mrb[0].mxu0
  %v428 = vpop.f32.mrb[0].mxu0
  %v429 = vadd.f32 %v96, %v428
  %v430 = vpop.f32.mrb[0].mxu0
  %431 = vmatprep.mubr.bf16.mxu0 0
  %432 = vmatmul.mubr.bf16.gmra.mrb[0].mxu0 %v299
  %v433 = vpop.f32.mrb[0].mxu0
  %v434 = vadd.f32 %v96, %v433
  %v435 = vpop.f32.mrb[0].mxu0
  %v436 = vpop.f32.mrb[0].mxu0
  %v437 = vadd.f32 %v96, %v436
  %v438 = vpop.f32.mrb[0].mxu0
  %439 = vmatprep.mubr.bf16.mxu0 0
  %440 = vmatmul.mubr.bf16.gmra.mrb[0].mxu0 %v302
  %v441 = vpop.f32.mrb[0].mxu0
  %v442 = vadd.f32 %v96, %v441
  %v443 = vpop.f32.mrb[0].mxu0
  %v444 = vpop.f32.mrb[0].mxu0
  %v445 = vadd.f32 %v96, %v444
  %v446 = vpop.f32.mrb[0].mxu0
  %447 = vmatprep.mubr.bf16.mxu0 0
  %448 = vmatmul.mubr.bf16.gmra.mrb[0].mxu0 %v305
  %v449 = vpop.f32.mrb[0].mxu0
  %v450 = vadd.f32 %v96, %v449
  %v451 = vpop.f32.mrb[0].mxu0
  %v452 = vpop.f32.mrb[0].mxu0
  %v453 = vadd.f32 %v96, %v452
  %v454 = vpop.f32.mrb[0].mxu0
  %455 = vmatprep.mubr.bf16.mxu0 0
  %456 = vmatmul.mubr.bf16.gmra.mrb[0].mxu0 %v308
  %v457 = vpop.f32.mrb[0].mxu0
  %v458 = vadd.f32 %v96, %v457
  %v459 = vpop.f32.mrb[0].mxu0
  %v460 = vpop.f32.mrb[0].mxu0
  %v461 = vadd.f32 %v96, %v460
  %v462 = vpop.f32.mrb[0].mxu0
  %463 = vmatprep.mubr.bf16.mxu0 0
  %464 = vmatmul.mubr.bf16.gmra.mrb[0].mxu0 %v311
  %v465 = vpop.f32.mrb[0].mxu0
  %v466 = vadd.f32 %v96, %v465
  %v467 = vpop.f32.mrb[0].mxu0
  %v468 = vpop.f32.mrb[0].mxu0
  %v469 = vadd.f32 %v96, %v468
  %v470 = vpop.f32.mrb[0].mxu0
  %471 = vmatprep.mubr.bf16.mxu0 0
  %472 = vmatmul.mubr.bf16.gmra.mrb[0].mxu0 %v314
  %v473 = vpop.f32.mrb[0].mxu0
  %v474 = vadd.f32 %v96, %v473
  %v475 = vpop.f32.mrb[0].mxu0
  %v476 = vpop.f32.mrb[0].mxu0
  %v477 = vadd.f32 %v96, %v476
  %v478 = vpop.f32.mrb[0].mxu0
  %479 = vmatprep.mubr.bf16.mxu0 0
  %480 = vmatmul.mubr.bf16.gmra.mrb[0].mxu0 %v317
  %v481 = vpop.f32.mrb[0].mxu0
  %v482 = vadd.f32 %v96, %v481
  %v483 = vpop.f32.mrb[0].mxu0
  %v484 = vpop.f32.mrb[0].mxu0
  %v485 = vadd.f32 %v96, %v484
  %v486 = vpop.f32.mrb[0].mxu0
  %487 = vmatprep.mubr.bf16.mxu0 0
  %488 = vmatmul.mubr.bf16.gmra.mrb[0].mxu0 %v320
  %v489 = vpop.f32.mrb[0].mxu0
  %v490 = vadd.f32 %v96, %v489
  %v491 = vpop.f32.mrb[0].mxu0
  %v492 = vpop.f32.mrb[0].mxu0
  %v493 = vadd.f32 %v96, %v492
  %v494 = vpop.f32.mrb[0].mxu0
  %495 = vmatprep.mubr.bf16.mxu0 0
  %496 = vmatmul.mubr.bf16.gmra.mrb[0].mxu0 %v323
  %v497 = vpop.f32.mrb[0].mxu0
  %v498 = vadd.f32 %v96, %v497
  %v499 = vpop.f32.mrb[0].mxu0
  %v500 = vpop.f32.mrb[0].mxu0
  %v501 = vadd.f32 %v96, %v500
  %v502 = vpop.f32.mrb[0].mxu0
  %503 = vmatprep.mubr.bf16.mxu0 0
  %504 = vmatmul.mubr.bf16.gmra.mrb[0].mxu0 %v326
  %v505 = vpop.f32.mrb[0].mxu0
  %v506 = vadd.f32 %v96, %v505
  %v507 = vpop.f32.mrb[0].mxu0
  %v508 = vpop.f32.mrb[0].mxu0
  %v509 = vadd.f32 %v96, %v508
  %v510 = vpop.f32.mrb[0].mxu0
  %511 = vmatprep.mubr.bf16.mxu0 0
  %512 = vmatmul.mubr.bf16.gmra.mrb[0].mxu0 %v329
  %v513 = vpop.f32.mrb[0].mxu0
  %v514 = vadd.f32 %v96, %v513
  %v515 = vpop.f32.mrb[0].mxu0
  %v516 = vpop.f32.mrb[0].mxu0
  %v517 = vadd.f32 %v96, %v516
  %v518 = vpop.f32.mrb[0].mxu0
  %519 = vmatprep.mubr.bf16.mxu0 0
  %520 = vmatmul.mubr.bf16.gmra.mrb[0].mxu0 %v332
  %v521 = vpop.f32.mrb[0].mxu0
  %v522 = vadd.f32 %v96, %v521
  %v523 = vpop.f32.mrb[0].mxu0
  %v524 = vpop.f32.mrb[0].mxu0
  %v525 = vadd.f32 %v96, %v524
  %v526 = vpop.f32.mrb[0].mxu0
  %527 = vmatprep.mubr.bf16.mxu0 0
  %528 = vmatmul.mubr.bf16.gmra.mrb[0].mxu0 %v335
  %v529 = vpop.f32.mrb[0].mxu0
  %v530 = vadd.f32 %v96, %v529
  %v531 = vpop.f32.mrb[0].mxu0
  %v532 = vpop.f32.mrb[0].mxu0
  %v533 = vadd.f32 %v96, %v532
  %v534 = vpop.f32.mrb[0].mxu0
  %535 = vmatprep.mubr.bf16.mxu0 0
  %536 = vmatmul.mubr.bf16.gmra.mrb[0].mxu0 %v338
  %v537 = vpop.f32.mrb[0].mxu0
  %v538 = vadd.f32 %v96, %v537
  %v539 = vpop.f32.mrb[0].mxu0
  %v540 = vpop.f32.mrb[0].mxu0
  %v541 = vadd.f32 %v96, %v540
  %v542 = vpop.f32.mrb[0].mxu0
  %543 = vmatprep.mubr.bf16.mxu0 0
  %544 = vmatmul.mubr.bf16.gmra.mrb[0].mxu0 %v341
  %v545 = vpop.f32.mrb[0].mxu0
  %v546 = vadd.f32 %v96, %v545
  %v547 = vpop.f32.mrb[0].mxu0
  %v548 = vpop.f32.mrb[0].mxu0
  %v549 = vadd.f32 %v96, %v548
  %v550 = vpop.f32.mrb[0].mxu0
  %551 = vmatprep.mubr.bf16.mxu0 0
  %552 = vmatmul.mubr.bf16.gmra.mrb[0].mxu0 %v344
  %v553 = vpop.f32.mrb[0].mxu0
  %v554 = vadd.f32 %v96, %v553
  %v555 = vpop.f32.mrb[0].mxu0
  %v556 = vpop.f32.mrb[0].mxu0
  %v557 = vadd.f32 %v96, %v556
  %v558 = vpop.f32.mrb[0].mxu0
  %559 = vmatprep.mubr.bf16.mxu0 0
  %560 = vmatmul.mubr.bf16.gmra.mrb[0].mxu0 %v347
  %v561 = vpop.f32.mrb[0].mxu0
  %v562 = vadd.f32 %v96, %v561
  %v563 = vpop.f32.mrb[0].mxu0
  %v564 = vpop.f32.mrb[0].mxu0
  %v565 = vadd.f32 %v96, %v564
  %v566 = vpop.f32.mrb[0].mxu0
  %567 = vmatprep.mubr.bf16.mxu0 0
  %568 = vmatmul.mubr.bf16.gmra.mrb[0].mxu0 %v350
  %v569 = vpop.f32.mrb[0].mxu0
  %v570 = vadd.f32 %v96, %v569
  %v571 = vpop.f32.mrb[0].mxu0
  %v572 = vpop.f32.mrb[0].mxu0
  %v573 = vadd.f32 %v96, %v572
  %v574 = vpop.f32.mrb[0].mxu0
  %575 = vmatprep.mubr.bf16.mxu0 0
  %576 = vmatmul.mubr.bf16.gmra.mrb[0].mxu0 %v353
  %v577 = vpop.f32.mrb[0].mxu0
  %v578 = vadd.f32 %v96, %v577
  %v579 = vpop.f32.mrb[0].mxu0
  %v580 = vpop.f32.mrb[0].mxu0
  %v581 = vadd.f32 %v96, %v580
  %v582 = vpop.f32.mrb[0].mxu0
  %583 = vmatprep.mubr.bf16.mxu0 0
  %584 = vmatmul.mubr.bf16.gmra.mrb[0].mxu0 %v356
  %v585 = vpop.f32.mrb[0].mxu0
  %v586 = vadd.f32 %v96, %v585
  %v587 = vpop.f32.mrb[0].mxu0
  %v588 = vpop.f32.mrb[0].mxu0
  %v589 = vadd.f32 %v96, %v588
  %v590 = vpop.f32.mrb[0].mxu0
  %591 = vmatprep.mubr.bf16.mxu0 0
  %592 = vmatmul.mubr.bf16.gmra.mrb[0].mxu0 %v359
  %v593 = vpop.f32.mrb[0].mxu0
  %v594 = vadd.f32 %v96, %v593
  %v595 = vpop.f32.mrb[0].mxu0
  %v596 = vpop.f32.mrb[0].mxu0
  %v597 = vadd.f32 %v96, %v596
  %v598 = vpop.f32.mrb[0].mxu0
  %599 = vmatprep.mubr.bf16.mxu0 0
  %600 = vmatmul.mubr.bf16.gmra.mrb[0].mxu0 %v362
  %v601 = vpop.f32.mrb[0].mxu0
  %v602 = vadd.f32 %v96, %v601
  %v603 = vpop.f32.mrb[0].mxu0
  %v604 = vpop.f32.mrb[0].mxu0
  %v605 = vadd.f32 %v96, %v604
  %v606 = vpop.f32.mrb[0].mxu0
  %607 = vmatprep.mubr.bf16.mxu0 0
  %608 = vmatmul.mubr.bf16.gmra.mrb[0].mxu0 %v365
  %v609 = vpop.f32.mrb[0].mxu0
  %v610 = vadd.f32 %v96, %v609
  %v611 = vpop.f32.mrb[0].mxu0
  %v612 = vpop.f32.mrb[0].mxu0
  %v613 = vadd.f32 %v96, %v612
  %v614 = vpop.f32.mrb[0].mxu0
  %615 = vmatprep.mubr.bf16.mxu0 0
  %616 = vmatmul.mubr.bf16.gmra.mrb[0].mxu0 %v368
  %v617 = vpop.f32.mrb[0].mxu0
  %v618 = vadd.f32 %v96, %v617
  %v619 = vpop.f32.mrb[0].mxu0
  %v620 = vpop.f32.mrb[0].mxu0
  %v621 = vadd.f32 %v96, %v620
  %v622 = vpop.f32.mrb[0].mxu0
  %623 = vmatprep.mubr.bf16.mxu0 0
  %624 = vmatmul.mubr.bf16.gmra.mrb[0].mxu0 %v371
  %v625 = vpop.f32.mrb[0].mxu0
  %v626 = vadd.f32 %v96, %v625
  %v627 = vpop.f32.mrb[0].mxu0
  %v628 = vpop.f32.mrb[0].mxu0
  %v629 = vadd.f32 %v96, %v628
  %v630 = vpop.f32.mrb[0].mxu0
  %631 = vmatprep.mubr.bf16.mxu0 0
  %632 = vmatmul.mubr.bf16.gmra.mrb[0].mxu0 %v374
  %v633 = vpop.f32.mrb[0].mxu0
  %v634 = vadd.f32 %v96, %v633
  %v635 = vpop.f32.mrb[0].mxu0
  %v636 = vpop.f32.mrb[0].mxu0
  %v637 = vadd.f32 %v96, %v636
  %v638 = vpop.f32.mrb[0].mxu0
  %639 = vmatprep.mubr.bf16.mxu0 0
  %640 = vmatmul.mubr.bf16.gmra.mrb[0].mxu0 %v377
  %v641 = vpop.f32.mrb[0].mxu0
  %v642 = vadd.f32 %v96, %v641
  %v643 = vpop.f32.mrb[0].mxu0
  %v644 = vpop.f32.mrb[0].mxu0
  %v645 = vadd.f32 %v96, %v644
  %v646 = vpop.f32.mrb[0].mxu0
  %647 = vmatprep.mubr.bf16.mxu0 0
  %648 = vmatmul.mubr.bf16.gmra.mrb[0].mxu0 %v380
  %v649 = vpop.f32.mrb[0].mxu0
  %v650 = vadd.f32 %v96, %v649
  %v651 = vpop.f32.mrb[0].mxu0
  %v652 = vpop.f32.mrb[0].mxu0
  %v653 = vadd.f32 %v96, %v652
  %v654 = vpop.f32.mrb[0].mxu0
  %655 = vmatprep.mubr.bf16.mxu0 0
  %656 = vmatmul.mubr.bf16.gmra.mrb[0].mxu0 %v383
  %v657 = vpop.f32.mrb[0].mxu0
  %v658 = vadd.f32 %v96, %v657
  %v659 = vpop.f32.mrb[0].mxu0
  %v660 = vpop.f32.mrb[0].mxu0
  %v661 = vadd.f32 %v96, %v660
  %v662 = vpop.f32.mrb[0].mxu0
  %663 = vmatprep.mubr.bf16.mxu0 0
  %664 = vmatmul.mubr.bf16.gmra.mrb[0].mxu0 %v386
  %v665 = vpop.f32.mrb[0].mxu0
  %v666 = vadd.f32 %v96, %v665
  %v667 = vpop.f32.mrb[0].mxu0
  %v668 = vpop.f32.mrb[0].mxu0
  %v669 = vadd.f32 %v96, %v668
  %v670 = vpop.f32.mrb[0].mxu0
  %671 = vmatprep.mubr.bf16.mxu0 0
  %672 = vmatmul.mubr.bf16.gmra.mrb[0].mxu0 %v389
  %v673 = vpop.f32.mrb[0].mxu0
  %v674 = vadd.f32 %v96, %v673
  %v675 = vpop.f32.mrb[0].mxu0
  %v676 = vpop.f32.mrb[0].mxu0
  %v677 = vadd.f32 %v96, %v676
  %v678 = vpop.f32.mrb[0].mxu0
  %679 = vdwg.mxu0
  %vm680 = vcmp.ge.f32.partialorder %v426, 0.0
  %vm681 = vcmp.ge.f32.partialorder %v429, 0.0
  %vm682 = vcmp.ge.f32.partialorder %v434, 0.0
  %vm683 = vcmp.ge.f32.partialorder %v437, 0.0
  %vm684 = vcmp.ge.f32.partialorder %v442, 0.0
  %vm685 = vcmp.ge.f32.partialorder %v445, 0.0
  %vm686 = vcmp.ge.f32.partialorder %v450, 0.0
  %vm687 = vcmp.ge.f32.partialorder %v453, 0.0
  %vm688 = vcmp.ge.f32.partialorder %v458, 0.0
  %vm689 = vcmp.ge.f32.partialorder %v461, 0.0
  %vm690 = vcmp.ge.f32.partialorder %v466, 0.0
  %vm691 = vcmp.ge.f32.partialorder %v469, 0.0
  %vm692 = vcmp.ge.f32.partialorder %v474, 0.0
  %vm693 = vcmp.ge.f32.partialorder %v477, 0.0
  %vm694 = vcmp.ge.f32.partialorder %v482, 0.0
  %vm695 = vcmp.ge.f32.partialorder %v485, 0.0
  %vm696 = vcmp.ge.f32.partialorder %v490, 0.0
  %vm697 = vcmp.ge.f32.partialorder %v493, 0.0
  %vm698 = vcmp.ge.f32.partialorder %v498, 0.0
  %vm699 = vcmp.ge.f32.partialorder %v501, 0.0
  %vm700 = vcmp.ge.f32.partialorder %v506, 0.0
  %vm701 = vcmp.ge.f32.partialorder %v509, 0.0
  %vm702 = vcmp.ge.f32.partialorder %v514, 0.0
  %vm703 = vcmp.ge.f32.partialorder %v517, 0.0
  %vm704 = vcmp.ge.f32.partialorder %v522, 0.0
  %vm705 = vcmp.ge.f32.partialorder %v525, 0.0
  %vm706 = vcmp.ge.f32.partialorder %v530, 0.0
  %vm707 = vcmp.ge.f32.partialorder %v533, 0.0
  %vm708 = vcmp.ge.f32.partialorder %v538, 0.0
  %vm709 = vcmp.ge.f32.partialorder %v541, 0.0
  %vm710 = vcmp.ge.f32.partialorder %v546, 0.0
  %vm711 = vcmp.ge.f32.partialorder %v549, 0.0
  %vm712 = vcmp.ge.f32.partialorder %v554, 0.0
  %vm713 = vcmp.ge.f32.partialorder %v557, 0.0
  %vm714 = vcmp.ge.f32.partialorder %v562, 0.0
  %vm715 = vcmp.ge.f32.partialorder %v565, 0.0
  %vm716 = vcmp.ge.f32.partialorder %v570, 0.0
  %vm717 = vcmp.ge.f32.partialorder %v573, 0.0
  %vm718 = vcmp.ge.f32.partialorder %v578, 0.0
  %vm719 = vcmp.ge.f32.partialorder %v581, 0.0
  %vm720 = vcmp.ge.f32.partialorder %v586, 0.0
  %vm721 = vcmp.ge.f32.partialorder %v589, 0.0
  %vm722 = vcmp.ge.f32.partialorder %v594, 0.0
  %vm723 = vcmp.ge.f32.partialorder %v597, 0.0
  %vm724 = vcmp.ge.f32.partialorder %v602, 0.0
  %vm725 = vcmp.ge.f32.partialorder %v605, 0.0
  %vm726 = vcmp.ge.f32.partialorder %v610, 0.0
  %vm727 = vcmp.ge.f32.partialorder %v613, 0.0
  %vm728 = vcmp.ge.f32.partialorder %v618, 0.0
  %vm729 = vcmp.ge.f32.partialorder %v621, 0.0
  %vm730 = vcmp.ge.f32.partialorder %v626, 0.0
  %vm731 = vcmp.ge.f32.partialorder %v629, 0.0
  %vm732 = vcmp.ge.f32.partialorder %v634, 0.0
  %vm733 = vcmp.ge.f32.partialorder %v637, 0.0
  %vm734 = vcmp.ge.f32.partialorder %v642, 0.0
  %vm735 = vcmp.ge.f32.partialorder %v645, 0.0
  %vm736 = vcmp.ge.f32.partialorder %v650, 0.0
  %vm737 = vcmp.ge.f32.partialorder %v653, 0.0
  %vm738 = vcmp.ge.f32.partialorder %v658, 0.0
  %vm739 = vcmp.ge.f32.partialorder %v661, 0.0
  %vm740 = vcmp.ge.f32.partialorder %v666, 0.0
  %vm741 = vcmp.ge.f32.partialorder %v669, 0.0
  %vm742 = vcmp.ge.f32.partialorder %v674, 0.0
  %vm743 = vcmp.ge.f32.partialorder %v677, 0.0
  %v744 = vmul.f32 %v426, 0.2
  %v745 = vmul.f32 %v429, 0.2
  %v746 = vmul.f32 %v434, 0.2
  %v747 = vmul.f32 %v437, 0.2
  %v748 = vmul.f32 %v442, 0.2
  %v749 = vmul.f32 %v445, 0.2
  %v750 = vmul.f32 %v450, 0.2
  %v751 = vmul.f32 %v453, 0.2
  %v752 = vmul.f32 %v458, 0.2
  %v753 = vmul.f32 %v461, 0.2
  %v754 = vmul.f32 %v466, 0.2
  %v755 = vmul.f32 %v469, 0.2
  %v756 = vmul.f32 %v474, 0.2
  %v757 = vmul.f32 %v477, 0.2
  %v758 = vmul.f32 %v482, 0.2
  %v759 = vmul.f32 %v485, 0.2
  %v760 = vmul.f32 %v490, 0.2
  %v761 = vmul.f32 %v493, 0.2
  %v762 = vmul.f32 %v498, 0.2
  %v763 = vmul.f32 %v501, 0.2
  %v764 = vmul.f32 %v506, 0.2
  %v765 = vmul.f32 %v509, 0.2
  %v766 = vmul.f32 %v514, 0.2
  %v767 = vmul.f32 %v517, 0.2
  %v768 = vmul.f32 %v522, 0.2
  %v769 = vmul.f32 %v525, 0.2
  %v770 = vmul.f32 %v530, 0.2
  %v771 = vmul.f32 %v533, 0.2
  %v772 = vmul.f32 %v538, 0.2
  %v773 = vmul.f32 %v541, 0.2
  %v774 = vmul.f32 %v546, 0.2
  %v775 = vmul.f32 %v549, 0.2
  %v776 = vmul.f32 %v554, 0.2
  %v777 = vmul.f32 %v557, 0.2
  %v778 = vmul.f32 %v562, 0.2
  %v779 = vmul.f32 %v565, 0.2
  %v780 = vmul.f32 %v570, 0.2
  %v781 = vmul.f32 %v573, 0.2
  %v782 = vmul.f32 %v578, 0.2
  %v783 = vmul.f32 %v581, 0.2
  %v784 = vmul.f32 %v586, 0.2
  %v785 = vmul.f32 %v589, 0.2
  %v786 = vmul.f32 %v594, 0.2
  %v787 = vmul.f32 %v597, 0.2
  %v788 = vmul.f32 %v602, 0.2
  %v789 = vmul.f32 %v605, 0.2
  %v790 = vmul.f32 %v610, 0.2
  %v791 = vmul.f32 %v613, 0.2
  %v792 = vmul.f32 %v618, 0.2
  %v793 = vmul.f32 %v621, 0.2
  %v794 = vmul.f32 %v626, 0.2
  %v795 = vmul.f32 %v629, 0.2
  %v796 = vmul.f32 %v634, 0.2
  %v797 = vmul.f32 %v637, 0.2
  %v798 = vmul.f32 %v642, 0.2
  %v799 = vmul.f32 %v645, 0.2
  %v800 = vmul.f32 %v650, 0.2
  %v801 = vmul.f32 %v653, 0.2
  %v802 = vmul.f32 %v658, 0.2
  %v803 = vmul.f32 %v661, 0.2
  %v804 = vmul.f32 %v666, 0.2
  %v805 = vmul.f32 %v669, 0.2
  %v806 = vmul.f32 %v674, 0.2
  %v807 = vmul.f32 %v677, 0.2
  %v808 = vsel %vm680, %v426, %v744
  %v809 = vsel %vm681, %v429, %v745
  %v810 = vsel %vm682, %v434, %v746
  %v811 = vsel %vm683, %v437, %v747
  %v812 = vsel %vm684, %v442, %v748
  %v813 = vsel %vm685, %v445, %v749
  %v814 = vsel %vm686, %v450, %v750
  %v815 = vsel %vm687, %v453, %v751
  %v816 = vsel %vm688, %v458, %v752
  %v817 = vsel %vm689, %v461, %v753
  %v818 = vsel %vm690, %v466, %v754
  %v819 = vsel %vm691, %v469, %v755
  %v820 = vsel %vm692, %v474, %v756
  %v821 = vsel %vm693, %v477, %v757
  %v822 = vsel %vm694, %v482, %v758
  %v823 = vsel %vm695, %v485, %v759
  %v824 = vsel %vm696, %v490, %v760
  %v825 = vsel %vm697, %v493, %v761
  %v826 = vsel %vm698, %v498, %v762
  %v827 = vsel %vm699, %v501, %v763
  %v828 = vsel %vm700, %v506, %v764
  %v829 = vsel %vm701, %v509, %v765
  %v830 = vsel %vm702, %v514, %v766
  %v831 = vsel %vm703, %v517, %v767
  %v832 = vsel %vm704, %v522, %v768
  %v833 = vsel %vm705, %v525, %v769
  %v834 = vsel %vm706, %v530, %v770
  %v835 = vsel %vm707, %v533, %v771
  %v836 = vsel %vm708, %v538, %v772
  %v837 = vsel %vm709, %v541, %v773
  %v838 = vsel %vm710, %v546, %v774
  %v839 = vsel %vm711, %v549, %v775
  %v840 = vsel %vm712, %v554, %v776
  %v841 = vsel %vm713, %v557, %v777
  %v842 = vsel %vm714, %v562, %v778
  %v843 = vsel %vm715, %v565, %v779
  %v844 = vsel %vm716, %v570, %v780
  %v845 = vsel %vm717, %v573, %v781
  %v846 = vsel %vm718, %v578, %v782
  %v847 = vsel %vm719, %v581, %v783
  %v848 = vsel %vm720, %v586, %v784
  %v849 = vsel %vm721, %v589, %v785
  %v850 = vsel %vm722, %v594, %v786
  %v851 = vsel %vm723, %v597, %v787
  %v852 = vsel %vm724, %v602, %v788
  %v853 = vsel %vm725, %v605, %v789
  %v854 = vsel %vm726, %v610, %v790
  %v855 = vsel %vm727, %v613, %v791
  %v856 = vsel %vm728, %v618, %v792
  %v857 = vsel %vm729, %v621, %v793
  %v858 = vsel %vm730, %v626, %v794
  %v859 = vsel %vm731, %v629, %v795
  %v860 = vsel %vm732, %v634, %v796
  %v861 = vsel %vm733, %v637, %v797
  %v862 = vsel %vm734, %v642, %v798
  %v863 = vsel %vm735, %v645, %v799
  %v864 = vsel %vm736, %v650, %v800
  %v865 = vsel %vm737, %v653, %v801
  %v866 = vsel %vm738, %v658, %v802
  %v867 = vsel %vm739, %v661, %v803
  %v868 = vsel %vm740, %v666, %v804
  %v869 = vsel %vm741, %v669, %v805
  %v870 = vsel %vm742, %v674, %v806
  %v871 = vsel %vm743, %v677, %v807
  %v872 = vpack.c.bf16 %v809, %v808
  %v873 = vpack.c.bf16 %v811, %v810
  %v874 = vpack.c.bf16 %v813, %v812
  %v875 = vpack.c.bf16 %v815, %v814
  %v876 = vpack.c.bf16 %v817, %v816
  %v877 = vpack.c.bf16 %v819, %v818
  %v878 = vpack.c.bf16 %v821, %v820
  %v879 = vpack.c.bf16 %v823, %v822
  %v880 = vpack.c.bf16 %v825, %v824
  %v881 = vpack.c.bf16 %v827, %v826
  %v882 = vpack.c.bf16 %v829, %v828
  %v883 = vpack.c.bf16 %v831, %v830
  %v884 = vpack.c.bf16 %v833, %v832
  %v885 = vpack.c.bf16 %v835, %v834
  %v886 = vpack.c.bf16 %v837, %v836
  %v887 = vpack.c.bf16 %v839, %v838
  %v888 = vpack.c.bf16 %v841, %v840
  %v889 = vpack.c.bf16 %v843, %v842
  %v890 = vpack.c.bf16 %v845, %v844
  %v891 = vpack.c.bf16 %v847, %v846
  %v892 = vpack.c.bf16 %v849, %v848
  %v893 = vpack.c.bf16 %v851, %v850
  %v894 = vpack.c.bf16 %v853, %v852
  %v895 = vpack.c.bf16 %v855, %v854
  %v896 = vpack.c.bf16 %v857, %v856
  %v897 = vpack.c.bf16 %v859, %v858
  %v898 = vpack.c.bf16 %v861, %v860
  %v899 = vpack.c.bf16 %v863, %v862
  %v900 = vpack.c.bf16 %v865, %v864
  %v901 = vpack.c.bf16 %v867, %v866
  %v902 = vpack.c.bf16 %v869, %v868
  %v903 = vpack.c.bf16 %v871, %v870
  %v936 = vunpack.c.l.b16 %v872
  %v937 = vunpack.c.h.b16 %v872
  %v938 = vunpack.c.l.b16 %v873
  %v939 = vunpack.c.h.b16 %v873
  %v940 = vunpack.c.l.b16 %v874
  %v941 = vunpack.c.h.b16 %v874
  %v942 = vunpack.c.l.b16 %v875
  %v943 = vunpack.c.h.b16 %v875
  %v944 = vunpack.c.l.b16 %v876
  %v945 = vunpack.c.h.b16 %v876
  %v946 = vunpack.c.l.b16 %v877
  %v947 = vunpack.c.h.b16 %v877
  %v948 = vunpack.c.l.b16 %v878
  %v949 = vunpack.c.h.b16 %v878
  %v950 = vunpack.c.l.b16 %v879
  %v951 = vunpack.c.h.b16 %v879
  %v952 = vunpack.c.l.b16 %v880
  %v953 = vunpack.c.h.b16 %v880
  %v954 = vunpack.c.l.b16 %v881
  %v955 = vunpack.c.h.b16 %v881
  %v956 = vunpack.c.l.b16 %v882
  %v957 = vunpack.c.h.b16 %v882
  %v958 = vunpack.c.l.b16 %v883
  %v959 = vunpack.c.h.b16 %v883
  %v960 = vunpack.c.l.b16 %v884
  %v961 = vunpack.c.h.b16 %v884
  %v962 = vunpack.c.l.b16 %v885
  %v963 = vunpack.c.h.b16 %v885
  %v964 = vunpack.c.l.b16 %v886
  %v965 = vunpack.c.h.b16 %v886
  %v966 = vunpack.c.l.b16 %v887
  %v967 = vunpack.c.h.b16 %v887
  %v968 = vunpack.c.l.b16 %v888
  %v969 = vunpack.c.h.b16 %v888
  %v970 = vunpack.c.l.b16 %v889
  %v971 = vunpack.c.h.b16 %v889
  %v972 = vunpack.c.l.b16 %v890
  %v973 = vunpack.c.h.b16 %v890
  %v974 = vunpack.c.l.b16 %v891
  %v975 = vunpack.c.h.b16 %v891
  %v976 = vunpack.c.l.b16 %v892
  %v977 = vunpack.c.h.b16 %v892
  %v978 = vunpack.c.l.b16 %v893
  %v979 = vunpack.c.h.b16 %v893
  %v980 = vunpack.c.l.b16 %v894
  %v981 = vunpack.c.h.b16 %v894
  %v982 = vunpack.c.l.b16 %v895
  %v983 = vunpack.c.h.b16 %v895
  %v984 = vunpack.c.l.b16 %v896
  %v985 = vunpack.c.h.b16 %v896
  %v986 = vunpack.c.l.b16 %v897
  %v987 = vunpack.c.h.b16 %v897
  %v988 = vunpack.c.l.b16 %v898
  %v989 = vunpack.c.h.b16 %v898
  %v990 = vunpack.c.l.b16 %v899
  %v991 = vunpack.c.h.b16 %v899
  %v992 = vunpack.c.l.b16 %v900
  %v993 = vunpack.c.h.b16 %v900
  %v994 = vunpack.c.l.b16 %v901
  %v995 = vunpack.c.h.b16 %v901
  %v996 = vunpack.c.l.b16 %v902
  %v997 = vunpack.c.h.b16 %v902
  %v998 = vunpack.c.l.b16 %v903
  %v999 = vunpack.c.h.b16 %v903
  %v1000 = vpack.c.b16 %v936, %v936
  %v1001 = vpack.c.b16 %v937, %v937
  %v1002 = vpack.c.b16 %v938, %v938
  %v1003 = vpack.c.b16 %v939, %v939
  %v1004 = vpack.c.b16 %v940, %v940
  %v1005 = vpack.c.b16 %v941, %v941
  %v1006 = vpack.c.b16 %v942, %v942
  %v1007 = vpack.c.b16 %v943, %v943
  %v1008 = vpack.c.b16 %v944, %v944
  %v1009 = vpack.c.b16 %v945, %v945
  %v1010 = vpack.c.b16 %v946, %v946
  %v1011 = vpack.c.b16 %v947, %v947
  %v1012 = vpack.c.b16 %v948, %v948
  %v1013 = vpack.c.b16 %v949, %v949
  %v1014 = vpack.c.b16 %v950, %v950
  %v1015 = vpack.c.b16 %v951, %v951
  %v1016 = vpack.c.b16 %v952, %v952
  %v1017 = vpack.c.b16 %v953, %v953
  %v1018 = vpack.c.b16 %v954, %v954
  %v1019 = vpack.c.b16 %v955, %v955
  %v1020 = vpack.c.b16 %v956, %v956
  %v1021 = vpack.c.b16 %v957, %v957
  %v1022 = vpack.c.b16 %v958, %v958
  %v1023 = vpack.c.b16 %v959, %v959
  %v1024 = vpack.c.b16 %v960, %v960
  %v1025 = vpack.c.b16 %v961, %v961
  %v1026 = vpack.c.b16 %v962, %v962
  %v1027 = vpack.c.b16 %v963, %v963
  %v1028 = vpack.c.b16 %v964, %v964
  %v1029 = vpack.c.b16 %v965, %v965
  %v1030 = vpack.c.b16 %v966, %v966
  %v1031 = vpack.c.b16 %v967, %v967
  %v1032 = vpack.c.b16 %v968, %v968
  %v1033 = vpack.c.b16 %v969, %v969
  %v1034 = vpack.c.b16 %v970, %v970
  %v1035 = vpack.c.b16 %v971, %v971
  %v1036 = vpack.c.b16 %v972, %v972
  %v1037 = vpack.c.b16 %v973, %v973
  %v1038 = vpack.c.b16 %v974, %v974
  %v1039 = vpack.c.b16 %v975, %v975
  %v1040 = vpack.c.b16 %v976, %v976
  %v1041 = vpack.c.b16 %v977, %v977
  %v1042 = vpack.c.b16 %v978, %v978
  %v1043 = vpack.c.b16 %v979, %v979
  %v1044 = vpack.c.b16 %v980, %v980
  %v1045 = vpack.c.b16 %v981, %v981
  %v1046 = vpack.c.b16 %v982, %v982
  %v1047 = vpack.c.b16 %v983, %v983
  %v1048 = vpack.c.b16 %v984, %v984
  %v1049 = vpack.c.b16 %v985, %v985
  %v1050 = vpack.c.b16 %v986, %v986
  %v1051 = vpack.c.b16 %v987, %v987
  %v1052 = vpack.c.b16 %v988, %v988
  %v1053 = vpack.c.b16 %v989, %v989
  %v1054 = vpack.c.b16 %v990, %v990
  %v1055 = vpack.c.b16 %v991, %v991
  %v1056 = vpack.c.b16 %v992, %v992
  %v1057 = vpack.c.b16 %v993, %v993
  %v1058 = vpack.c.b16 %v994, %v994
  %v1059 = vpack.c.b16 %v995, %v995
  %v1060 = vpack.c.b16 %v996, %v996
  %v1061 = vpack.c.b16 %v997, %v997
  %v1062 = vpack.c.b16 %v998, %v998
  %v1063 = vpack.c.b16 %v999, %v999
  %vm1128 = vcmask 519168
  %1129 = vst.msk [vmem:[%s3] sm:$0xf] %vm1128, %v1000
  %1130 = vst.msk [vmem:[%s3 + $0x4] sm:$0xf] %vm1128, %v1001
  %1131 = vst.msk [vmem:[%s3 + $0x8] sm:$0xf] %vm1128, %v1002
  %1132 = vst.msk [vmem:[%s3 + $0xc] sm:$0xf] %vm1128, %v1003
  %1133 = vst.msk [vmem:[%s3 + $0x10] sm:$0xf] %vm1128, %v1004
  %1134 = vst.msk [vmem:[%s3 + $0x14] sm:$0xf] %vm1128, %v1005
  %1135 = vst.msk [vmem:[%s3 + $0x18] sm:$0xf] %vm1128, %v1006
  %1136 = vst.msk [vmem:[%s3 + $0x1c] sm:$0xf] %vm1128, %v1007
  %1137 = vst.msk [vmem:[%s3 + $0x20] sm:$0xf] %vm1128, %v1008
  %1138 = vst.msk [vmem:[%s3 + $0x24] sm:$0xf] %vm1128, %v1009
  %1139 = vst.msk [vmem:[%s3 + $0x28] sm:$0xf] %vm1128, %v1010
  %1140 = vst.msk [vmem:[%s3 + $0x2c] sm:$0xf] %vm1128, %v1011
  %1141 = vst.msk [vmem:[%s3 + $0x30] sm:$0xf] %vm1128, %v1012
  %1142 = vst.msk [vmem:[%s3 + $0x34] sm:$0xf] %vm1128, %v1013
  %1143 = vst.msk [vmem:[%s3 + $0x38] sm:$0xf] %vm1128, %v1014
  %1144 = vst.msk [vmem:[%s3 + $0x3c] sm:$0xf] %vm1128, %v1015
  %1145 = vst.msk [vmem:[%s3 + $0x40] sm:$0xf] %vm1128, %v1016
  %1146 = vst.msk [vmem:[%s3 + $0x44] sm:$0xf] %vm1128, %v1017
  %1147 = vst.msk [vmem:[%s3 + $0x48] sm:$0xf] %vm1128, %v1018
  %1148 = vst.msk [vmem:[%s3 + $0x4c] sm:$0xf] %vm1128, %v1019
  %1149 = vst.msk [vmem:[%s3 + $0x50] sm:$0xf] %vm1128, %v1020
  %1150 = vst.msk [vmem:[%s3 + $0x54] sm:$0xf] %vm1128, %v1021
  %1151 = vst.msk [vmem:[%s3 + $0x58] sm:$0xf] %vm1128, %v1022
  %1152 = vst.msk [vmem:[%s3 + $0x5c] sm:$0xf] %vm1128, %v1023
  %1153 = vst.msk [vmem:[%s3 + $0x60] sm:$0xf] %vm1128, %v1024
  %1154 = vst.msk [vmem:[%s3 + $0x64] sm:$0xf] %vm1128, %v1025
  %1155 = vst.msk [vmem:[%s3 + $0x68] sm:$0xf] %vm1128, %v1026
  %1156 = vst.msk [vmem:[%s3 + $0x6c] sm:$0xf] %vm1128, %v1027
  %1157 = vst.msk [vmem:[%s3 + $0x70] sm:$0xf] %vm1128, %v1028
  %1158 = vst.msk [vmem:[%s3 + $0x74] sm:$0xf] %vm1128, %v1029
  %1159 = vst.msk [vmem:[%s3 + $0x78] sm:$0xf] %vm1128, %v1030
  %1160 = vst.msk [vmem:[%s3 + $0x7c] sm:$0xf] %vm1128, %v1031
  %1161 = vst.msk [vmem:[%s3 + $0x80] sm:$0xf] %vm1128, %v1032
  %1162 = vst.msk [vmem:[%s3 + $0x84] sm:$0xf] %vm1128, %v1033
  %1163 = vst.msk [vmem:[%s3 + $0x88] sm:$0xf] %vm1128, %v1034
  %1164 = vst.msk [vmem:[%s3 + $0x8c] sm:$0xf] %vm1128, %v1035
  %1165 = vst.msk [vmem:[%s3 + $0x90] sm:$0xf] %vm1128, %v1036
  %1166 = vst.msk [vmem:[%s3 + $0x94] sm:$0xf] %vm1128, %v1037
  %1167 = vst.msk [vmem:[%s3 + $0x98] sm:$0xf] %vm1128, %v1038
  %1168 = vst.msk [vmem:[%s3 + $0x9c] sm:$0xf] %vm1128, %v1039
  %1169 = vst.msk [vmem:[%s3 + $0xa0] sm:$0xf] %vm1128, %v1040
  %1170 = vst.msk [vmem:[%s3 + $0xa4] sm:$0xf] %vm1128, %v1041
  %1171 = vst.msk [vmem:[%s3 + $0xa8] sm:$0xf] %vm1128, %v1042
  %1172 = vst.msk [vmem:[%s3 + $0xac] sm:$0xf] %vm1128, %v1043
  %1173 = vst.msk [vmem:[%s3 + $0xb0] sm:$0xf] %vm1128, %v1044
  %1174 = vst.msk [vmem:[%s3 + $0xb4] sm:$0xf] %vm1128, %v1045
  %1175 = vst.msk [vmem:[%s3 + $0xb8] sm:$0xf] %vm1128, %v1046
  %1176 = vst.msk [vmem:[%s3 + $0xbc] sm:$0xf] %vm1128, %v1047
  %1177 = vst.msk [vmem:[%s3 + $0xc0] sm:$0xf] %vm1128, %v1048
  %1178 = vst.msk [vmem:[%s3 + $0xc4] sm:$0xf] %vm1128, %v1049
  %1179 = vst.msk [vmem:[%s3 + $0xc8] sm:$0xf] %vm1128, %v1050
  %1180 = vst.msk [vmem:[%s3 + $0xcc] sm:$0xf] %vm1128, %v1051
  %1181 = vst.msk [vmem:[%s3 + $0xd0] sm:$0xf] %vm1128, %v1052
  %1182 = vst.msk [vmem:[%s3 + $0xd4] sm:$0xf] %vm1128, %v1053
  %1183 = vst.msk [vmem:[%s3 + $0xd8] sm:$0xf] %vm1128, %v1054
  %1184 = vst.msk [vmem:[%s3 + $0xdc] sm:$0xf] %vm1128, %v1055
  %1185 = vst.msk [vmem:[%s3 + $0xe0] sm:$0xf] %vm1128, %v1056
  %1186 = vst.msk [vmem:[%s3 + $0xe4] sm:$0xf] %vm1128, %v1057
  %1187 = vst.msk [vmem:[%s3 + $0xe8] sm:$0xf] %vm1128, %v1058
  %1188 = vst.msk [vmem:[%s3 + $0xec] sm:$0xf] %vm1128, %v1059
  %1189 = vst.msk [vmem:[%s3 + $0xf0] sm:$0xf] %vm1128, %v1060
  %1190 = vst.msk [vmem:[%s3 + $0xf4] sm:$0xf] %vm1128, %v1061
  %1191 = vst.msk [vmem:[%s3 + $0xf8] sm:$0xf] %vm1128, %v1062
  %1192 = vst.msk [vmem:[%s3 + $0xfc] sm:$0xf] %vm1128, %v1063
  // Predicated region
  $region14: #{tpu_custom_call.1} parent=0 // pred_check
    _
  $region15: #{tpu_custom_call.1} parent=0 // pred_check_branch
    %1194 = sbr.rel (0) target = $region17
  $region16: #{tpu_custom_call.1} parent=0 // pred_region
    _
  $region17: #{tpu_custom_call.1} parent=0 // pred_fallthru
    _
  // Predicated region
  $region18: #{tpu_custom_call.1} parent=0 // pred_check
    _
  $region19: #{tpu_custom_call.1} parent=0 // pred_check_branch
    %1196 = sbr.rel (0) target = $region21
  $region20: #{tpu_custom_call.1} parent=0 // pred_region
    _
  $region21: #{tpu_custom_call.1} parent=0 // pred_fallthru
    _

</llo_original>
